<compile_context>
chip_gen: v5e
topology: v5e:2x2
jax: 0.10.0
libtpu: 0.0.40
codegen_flags: <defaults>
</compile_context>

<pallas_src>
import functools

import jax
import jax.numpy as jnp
from jax.experimental import pallas as pl
from jax.experimental.pallas import tpu as pltpu

LN_EPS = 1e-5  # torch.nn.LayerNorm default eps (elementwise_affine=False)


def _wavelet_kernel(x_ref, w_ref, out_ref, *, f_in, ws, apply_layernorm):
    # Conv-as-matmul on the MXU: (R, L)bf16 @ (L, f_in*WS)bf16 -> (R, f_in*WS)f32
    y = jnp.dot(x_ref[...], w_ref[...], preferred_element_type=jnp.float32)
    if apply_layernorm:
        r = y.shape[0]
        # per-(b, c, filter) stats over the window axis via reshape + reduce
        # (replaces the old block-diagonal averaging matmul).
        y3 = y.reshape(r, f_in, ws)
        mean = jnp.mean(y3, axis=-1, keepdims=True)
        centered = y3 - mean
        var = jnp.mean(centered * centered, axis=-1, keepdims=True)  # two-pass
        y = (centered * jax.lax.rsqrt(var + LN_EPS)).reshape(r, f_in * ws)
    out_ref[...] = y.astype(out_ref.dtype)


def _default_rows_per_block(num_rows, target=512):
    """Largest divisor of num_rows that keeps tiles modest and (if possible)
    gives >=2 grid steps.  Divisors must be a multiple of 8 (sublane rule)
    unless they equal num_rows."""
    divs = [d for d in range(1, num_rows + 1)
            if num_rows % d == 0 and (d % 8 == 0 or d == num_rows)]
    multi = [d for d in divs if d <= target and num_rows // d >= 2]
    if multi:
        return max(multi)
    small = [d for d in divs if d <= target]
    if small:
        return max(small)
    return num_rows


def _banded_weight(weight, ws, pad):
    """Wband[l, f*WS + t] = weight[f, l - t] if 0 <= l - t < K else 0."""
    f_in, k_len = weight.shape
    length = ws + 2 * pad
    l_idx = jnp.arange(length)[:, None]            # (L, 1)
    t_idx = jnp.arange(ws)[None, :]                # (1, WS)
    k = l_idx - t_idx                              # (L, WS)
    valid = (k >= 0) & (k < k_len)
    taps = jnp.take(weight, jnp.clip(k, 0, k_len - 1), axis=1)   # (f_in, L, WS)
    taps = jnp.where(valid[None, :, :], taps, 0.0)
    return jnp.transpose(taps, (1, 0, 2)).reshape(length, f_in * ws)


def wavelet_learnable_filter(x, weight, *, apply_layernorm=True,
                             rows_per_block=None,
                             compute_dtype=jnp.bfloat16):
    """x: (B, 1, WS, C) f32;  weight: (f_in, K=WS) f32  ->  (B, f_in, WS, C)."""
    B, cin, WS, C = x.shape
    assert cin == 1, "wavelet_conv has a single input channel"
    f_in, K = weight.shape
    assert K == WS, "ScaledFilter length equals windowsize (torch.cat constraint)"
    pad = (WS - 1) // 2 if (WS % 2 == 1) else WS // 2
    L = WS + 2 * pad
    N = f_in * WS
    G = B * C

    # ---- XLA glue: permute + reflection pad only (no im2col expansion) -----
    x_rows = jnp.transpose(x[:, 0, :, :], (0, 2, 1)).reshape(G, WS)   # (B*C, WS)
    x_pad = jnp.pad(x_rows, ((0, 0), (pad, pad)), mode="reflect")     # (G, L)

    # banded weight matrix: conv == x_pad @ w_band   (L, f_in*WS)
    w_band = _banded_weight(jnp.asarray(weight, jnp.float32), WS, pad)

    if rows_per_block is None:
        rows_per_block = _default_rows_per_block(G)
    assert G % rows_per_block == 0, (G, rows_per_block)
    assert rows_per_block % 8 == 0 or rows_per_block == G
    grid = (G // rows_per_block,)

    x_pad_c = x_pad.astype(compute_dtype)      # halve HBM read traffic
    w_band_c = w_band.astype(compute_dtype)

    bytes_accessed = (x_pad_c.size * x_pad_c.dtype.itemsize
                      + w_band_c.size * w_band_c.dtype.itemsize
                      + G * N * 4)
    cost = pl.CostEstimate(
        flops=int(2 * G * L * N),
        transcendentals=int(G * f_in) if apply_layernorm else 0,
        bytes_accessed=int(bytes_accessed))

    y = pl.pallas_call(
        functools.partial(_wavelet_kernel, f_in=f_in, ws=WS,
                          apply_layernorm=apply_layernorm),
        out_shape=jax.ShapeDtypeStruct((G, N), jnp.float32),
        grid_spec=pltpu.PrefetchScalarGridSpec(
            num_scalar_prefetch=0,
            grid=grid,
            in_specs=[
                pl.BlockSpec((rows_per_block, L), lambda i: (i, 0)),
                pl.BlockSpec((L, N), lambda i: (0, 0)),   # weights stay resident
            ],
            out_specs=pl.BlockSpec((rows_per_block, N), lambda i: (i, 0)),
        ),
        compiler_params=pltpu.CompilerParams(
            dimension_semantics=("parallel",)),
        cost_estimate=cost,
    )(x_pad_c, w_band_c)

    # (B*C, f_in*WS) -> (B, C, f_in, WS) -> (B, f_in, WS, C)
    # Single XLA permute; doing it in-kernel would mean C(<128)-wide masked stores.
    return jnp.transpose(y.reshape(B, C, f_in, WS), (0, 2, 3, 1))


def reference(x, weight, apply_layernorm=True):
    """Pure-JAX replica of the PyTorch forward (for correctness checking)."""
    B, _, WS, C = x.shape
    f_in, K = weight.shape
    pad = (WS - 1) // 2 if (WS % 2 == 1) else WS // 2
    xt = jnp.transpose(x, (0, 1, 3, 2))                           # (B, 1, C, WS)
    xp = jnp.pad(xt, ((0, 0), (0, 0), (0, 0), (pad, pad)), mode="reflect")
    cols = [jax.lax.dynamic_slice_in_dim(xp, t, K, axis=3) for t in range(WS)]
    out = jnp.stack(
        [jnp.einsum("bzcw,fw->bfc", c, weight) for c in cols], axis=-1
    )                                                             # (B, f_in, C, WS)
    if apply_layernorm:
        mean = out.mean(-1, keepdims=True)
        var = out.var(-1, keepdims=True)
        out = (out - mean) / jnp.sqrt(var + LN_EPS)
    return jnp.transpose(out, (0, 1, 3, 2))                       # (B, f_in, WS, C)


if __name__ == "__main__":
    # args.windowsize = 16 (even branch); B*C = 32 -> 2 grid steps at the
    # default block size (exercises pipelining / v7x megacore sharding).
    B, C, WS, f_in = 2, 16, 16, 8
    K = WS

    key = jax.random.PRNGKey(0)
    kx, kw = jax.random.split(key)
    x = jax.random.normal(kx, (B, 1, WS, C), dtype=jnp.float32)

    # Deterministic synthetic wavelet bank: filter 0 is the identity "raw"
    # delta filter exactly as in __init__; the remaining f_in-1 filters are
    # fixed pseudo-random stand-ins.
    # TODO(synk): PrepareWavelets/FiltersExtention (pywt wavelet selection) not
    # reproduced; weights are synthetic but deterministic.
    center = (WS - 1) // 2 if WS % 2 == 1 else WS // 2
    weight = 0.1 * jax.random.normal(kw, (f_in, K), dtype=jnp.float32)
    delta = jnp.zeros((K,), jnp.float32).at[center].set(1.0)
    weight = weight.at[0].set(delta)

    # Quantize inputs to bf16 once so the bf16-MXU kernel and the f32
    # reference see identical operands (accumulation is f32 in both).
    x = x.astype(jnp.bfloat16).astype(jnp.float32)
    weight = weight.astype(jnp.bfloat16).astype(jnp.float32)

    out = wavelet_learnable_filter(x, weight, apply_layernorm=True)
    out = jax.block_until_ready(out)

    ref = reference(x, weight, apply_layernorm=True)
    assert out.shape == (B, f_in, WS, C), out.shape
    max_err = float(jnp.abs(out - ref).max())
    assert jnp.allclose(out, ref, atol=2e-3, rtol=2e-3), max_err
    print("KERNEL_OK")
</pallas_src>

<mosaic_0001>
module attributes {stable_mosaic.version = 11 : i64} {
  func.func @_wavelet_kernel(%arg0: i32, %arg1: memref<16x32xbf16, #tpu.memory_space<vmem>>, %arg2: memref<32x128xbf16, #tpu.memory_space<vmem>>, %arg3: memref<16x128xf32, #tpu.memory_space<vmem>>) attributes {dimension_semantics = [#tpu.dimension_semantics<parallel>], iteration_bounds = array<i64: 2>, scalar_prefetch = 0 : i64, scratch_operands = 0 : i64, tpu.core_type = #tpu.core_type<tc>, window_params = [{transform_indices = @transform_0, window_bounds = array<i64: 16, 32>}, {pipeline_mode = #tpu.pipeline_mode<synchronous>, transform_indices = @transform_1, window_bounds = array<i64: 32, 128>}, {transform_indices = @transform_2, window_bounds = array<i64: 16, 128>}]} {
    %c0 = arith.constant 0 : index
    %c0_0 = arith.constant 0 : index
    %0 = vector.load %arg1[%c0, %c0_0] : memref<16x32xbf16, #tpu.memory_space<vmem>>, vector<16x32xbf16>
    %c0_1 = arith.constant 0 : index
    %c0_2 = arith.constant 0 : index
    %1 = vector.load %arg2[%c0_1, %c0_2] : memref<32x128xbf16, #tpu.memory_space<vmem>>, vector<32x128xbf16>
    %cst = arith.constant dense<0.000000e+00> : vector<16x128xf32>
    %2 = tpu.matmul %0, %1, %cst {dimension_numbers = #tpu.dot_dimension_numbers<[1], [0], [0], [1], [0, 0, 1, 1], [], []>} : vector<16x32xbf16>, vector<32x128xbf16>, vector<16x128xf32> -> vector<16x128xf32>
    %3 = vector.shape_cast %2 : vector<16x128xf32> to vector<16x8x16xf32>
    %cst_3 = arith.constant dense<0.000000e+00> : vector<16x8xf32>
    %4 = vector.multi_reduction <add>, %3, %cst_3 [2] : vector<16x8x16xf32> to vector<16x8xf32>
    %5 = vector.shape_cast %4 : vector<16x8xf32> to vector<16x8x1xf32>
    %cst_4 = arith.constant 1.600000e+01 : f32
    %6 = vector.broadcast %cst_4 : f32 to vector<16x8x1xf32>
    %7 = arith.divf %5, %6 : vector<16x8x1xf32>
    %8 = vector.broadcast %7 : vector<16x8x1xf32> to vector<16x8x16xf32>
    %9 = arith.subf %3, %8 : vector<16x8x16xf32>
    %10 = arith.mulf %9, %9 : vector<16x8x16xf32>
    %cst_5 = arith.constant dense<0.000000e+00> : vector<16x8xf32>
    %11 = vector.multi_reduction <add>, %10, %cst_5 [2] : vector<16x8x16xf32> to vector<16x8xf32>
    %12 = vector.shape_cast %11 : vector<16x8xf32> to vector<16x8x1xf32>
    %cst_6 = arith.constant 1.600000e+01 : f32
    %13 = vector.broadcast %cst_6 : f32 to vector<16x8x1xf32>
    %14 = arith.divf %12, %13 : vector<16x8x1xf32>
    %cst_7 = arith.constant 9.99999974E-6 : f32
    %15 = vector.broadcast %cst_7 : f32 to vector<16x8x1xf32>
    %16 = arith.addf %14, %15 : vector<16x8x1xf32>
    %17 = math.rsqrt %16 : vector<16x8x1xf32>
    %18 = vector.broadcast %17 : vector<16x8x1xf32> to vector<16x8x16xf32>
    %19 = arith.mulf %9, %18 : vector<16x8x16xf32>
    %20 = vector.shape_cast %19 : vector<16x8x16xf32> to vector<16x128xf32>
    %c0_8 = arith.constant 0 : index
    %c0_9 = arith.constant 0 : index
    %21 = vector.load %arg3[%c0_8, %c0_9] : memref<16x128xf32, #tpu.memory_space<vmem>>, vector<16x128xf32>
    tpu.vector_store %arg3[%c0_8, %c0_9], %20 {strides = array<i32>} : memref<16x128xf32, #tpu.memory_space<vmem>>, vector<16x128xf32>,
    return
  }
  func.func @transform_0(%arg0: i32) -> (i32, i32) {
    %c0_i32 = arith.constant 0 : i32
    %c0_i32_0 = arith.constant 0 : i32
    return %arg0, %c0_i32 : i32, i32
  }
  func.func @transform_1(%arg0: i32) -> (i32, i32) {
    %c0_i32 = arith.constant 0 : i32
    %c0_i32_0 = arith.constant 0 : i32
    %c0_i32_1 = arith.constant 0 : i32
    return %c0_i32, %c0_i32_0 : i32, i32
  }
  func.func @transform_2(%arg0: i32) -> (i32, i32) {
    %c0_i32 = arith.constant 0 : i32
    %c0_i32_0 = arith.constant 0 : i32
    return %arg0, %c0_i32 : i32, i32
  }
}

</mosaic_0001>

<llo_original>
// kernel: tpu_custom_call.1
$region0: #{tpu_custom_call.1}
  #allocation0 [shape = 'u32[]', space=smem, size = 0x4, offset = 0x4, fixed_abs, tag = 'smem constant byte address 0x4 - core index']
  #allocation1 [shape = 'u32[72,128]{1,0:T(1,128)}', space=vmem, size = 0x9000, scoped, tag = 'internal scratch']
  %s0 = inlined_call_operand.hbm [shape: bf16[32,32], index: 0, kind: input, shape index: {}]
  %s1 = inlined_call_operand.hbm [shape: bf16[32,128], index: 1, kind: input, shape index: {}]
  %s2 = inlined_call_operand.hbm [shape: f32[32,128], index: 2, kind: output, shape index: {}]
  %s3 = sld [smem:[#allocation0]]
  $region49: #{tpu_custom_call.1} parent=0
    _
  %s5 = ssub.s32 1, %s3
  %s6 = scalar_select 0, %s5, %s3
  $region1: #{tpu_custom_call.1} parent=0
    #allocation2 [shape = 'u8[8192]{0}', space=vmem, size = 0x2000, scoped, tag = 'input window, operand 0']
    #allocation3 [shape = 's32[2]{0}', space=sflag, size = 0x8, scoped, tag = 'scoped memory for tpu_custom_call.1']
    #allocation4 [shape = 's32[2]{0}', space=sflag, size = 0x8, scoped, tag = 'scoped memory for tpu_custom_call.1']
    #allocation5 [shape = 'u8[8192]{0}', space=vmem, size = 0x2000, scoped, tag = 'input window, operand 1, single buffered']
    #allocation6 [shape = 's32[1]{0}', space=sflag, size = 0x4, scoped, tag = 'scoped memory for tpu_custom_call.1']
    #allocation7 [shape = 'u8[16384]{0}', space=vmem, size = 0x4000, scoped, tag = 'output window, operand 0']
    %7 = vsyncpa [#allocation3], 0
    %s8 = scalar_lea.sflag [#allocation3], 1
    %9 = vsyncpa %s8, 0
    %10 = vsyncpa [#allocation6], 0
    %11 = vsyncpa [#allocation4], 0
    %s12 = scalar_lea.sflag [#allocation4], 1
    %13 = vsyncpa %s12, 0
    loop: start=0, step=1, limit=4
    $region2: #{tpu_custom_call.1} parent=1 // loop_pre_header
      _
    $region3: #{tpu_custom_call.1} parent=1 // loop_header
      %s15 = sphi 0, %s19
      %p16 = scmp.ge.s32.totalorder %s15, 4
      %s25 = sphi 0, %s27
      %s28 = sphi 0, %s25
      %s29 = sphi 0, %s28
      %s45 = sphi 0, %s29
      %s49 = sphi 0, %s49
      %s51 = sphi 0, %s49
      %s52 = sphi 0, %s51
      %s66 = sphi 0, %s52
      %s72 = sphi 0, %s74
      %s75 = sphi 0, %s72
      %s76 = sphi 0, %s75
      %s92 = sphi 0, %s76
    $region4: #{tpu_custom_call.1} parent=1 // loop_header_branch
      %18 = sbr.rel (%p16) target = $region8
    $region5: #{tpu_custom_call.1} parent=1 // loop_body
      %s20 = ssub.s32 %s15, 1
      %s21 = ssub.s32 %s15, 2
      %s22 = sadd.s32 %s15, 1
      %s23 = ssub.s32 %s15, %s22
      %p24 = scmp.eq.s32.totalorder %s23, 0
      %s26 = sadd.s32 %s25, 1
      %s27 = scalar_select %p24, %s25, %s26
      %p30 = pneg %p24
      %p31 = scmp.eq.s32.totalorder %s15, 1
      %p32 = por %p30, %p31
      %p33 = scmp.ne.s32.totalorder %s25, %s28
      %p34 = scmp.eq.s32.totalorder %s15, 0
      %p35 = por %p33, %p34
      %p36 = scmp.ne.s32.totalorder %s25, %s28
      %p37 = scmp.eq.s32.totalorder %s20, 1
      %p38 = por %p36, %p37
      %p39 = scmp.ne.s32.totalorder %s28, %s29
      %p40 = scmp.eq.s32.totalorder %s20, 0
      %p41 = por %p39, %p40
      %p42 = scmp.ne.s32.totalorder %s28, %s29
      %p43 = scmp.eq.s32.totalorder %s21, 1
      %p44 = por %p42, %p43
      %p46 = scmp.ne.s32.totalorder %s29, %s45
      %p47 = scmp.eq.s32.totalorder %s21, 0
      %p48 = por %p46, %p47
      %s50 = sadd.s32 %s49, 1
      %p53 = scmp.eq.s32.totalorder %s15, 1
      %p54 = scmp.ne.s32.totalorder %s49, %s51
      %p55 = scmp.eq.s32.totalorder %s15, 0
      %p56 = por %p54, %p55
      %p57 = scmp.ne.s32.totalorder %s49, %s51
      %p58 = scmp.eq.s32.totalorder %s20, 1
      %p59 = por %p57, %p58
      %p60 = scmp.ne.s32.totalorder %s51, %s52
      %p61 = scmp.eq.s32.totalorder %s20, 0
      %p62 = por %p60, %p61
      %p63 = scmp.ne.s32.totalorder %s51, %s52
      %p64 = scmp.eq.s32.totalorder %s21, 1
      %p65 = por %p63, %p64
      %p67 = scmp.ne.s32.totalorder %s52, %s66
      %p68 = scmp.eq.s32.totalorder %s21, 0
      %p69 = por %p67, %p68
      %s70 = ssub.s32 %s15, %s22
      %p71 = scmp.eq.s32.totalorder %s70, 0
      %s73 = sadd.s32 %s72, 1
      %s74 = scalar_select %p71, %s72, %s73
      %p77 = pneg %p71
      %p78 = scmp.eq.s32.totalorder %s15, 1
      %p79 = por %p77, %p78
      %p80 = scmp.ne.s32.totalorder %s72, %s75
      %p81 = scmp.eq.s32.totalorder %s15, 0
      %p82 = por %p80, %p81
      %p83 = scmp.ne.s32.totalorder %s72, %s75
      %p84 = scmp.eq.s32.totalorder %s20, 1
      %p85 = por %p83, %p84
      %p86 = scmp.ne.s32.totalorder %s75, %s76
      %p87 = scmp.eq.s32.totalorder %s20, 0
      %p88 = por %p86, %p87
      %p89 = scmp.ne.s32.totalorder %s75, %s76
      %p90 = scmp.eq.s32.totalorder %s21, 1
      %p91 = por %p89, %p90
      %p93 = scmp.ne.s32.totalorder %s76, %s92
      %p94 = scmp.eq.s32.totalorder %s21, 0
      %p95 = por %p93, %p94
      %p96 = scmp.le.s32.totalorder 1, %s15
      %p97 = scmp.lt.s32.totalorder %s15, 3
      %p98 = pnand %p96, %p97
      %p99 = pneg %p98
      // Predicated region
      $region9: #{tpu_custom_call.1} parent=5 // pred_check
        _
      $region10: #{tpu_custom_call.1} parent=5 // pred_check_branch
        %101 = sbr.rel (%p98) target = $region12
      $region11: #{tpu_custom_call.1} parent=5 // pred_region
        %s102 = ssub.s32 %s15, 1
        // Predicated region
        $region13: #{tpu_custom_call.1} parent=11 // pred_check
          %p103 = pneg %p62
        $region14: #{tpu_custom_call.1} parent=11 // pred_check_branch
          %105 = sbr.rel (%p103) target = $region16
        $region15: #{tpu_custom_call.1} parent=11 // pred_region
          %107 = vsyncadd [#allocation6], 0
          %s108 = sshll.u32 %s1, 4
          %s109 = int_to_ptr.hbm [resolvable:$true] %s108
          %s110 = sshll.u32 [#allocation5], 4
          %s111 = int_to_ptr.vmem [resolvable:$true] %s110
          %116 = dma.hbm_to_vmem [thread:$0]  %s109, 256, %s111, [#allocation6], 64, 64, 4
        $region16: #{tpu_custom_call.1} parent=11 // pred_fallthru
          _
      $region12: #{tpu_custom_call.1} parent=5 // pred_fallthru
        _
      %p117 = scmp.lt.s32.totalorder %s15, 2
      // Predicated region
      $region17: #{tpu_custom_call.1} parent=5 // pred_check
        %p118 = pneg %p117
      $region18: #{tpu_custom_call.1} parent=5 // pred_check_branch
        %120 = sbr.rel (%p118) target = $region20
      $region19: #{tpu_custom_call.1} parent=5 // pred_region
        // Predicated region
        $region21: #{tpu_custom_call.1} parent=19 // pred_check
          %p121 = pneg %p35
        $region22: #{tpu_custom_call.1} parent=19 // pred_check_branch
          %123 = sbr.rel (%p121) target = $region24
        $region23: #{tpu_custom_call.1} parent=19 // pred_region
          %s124 = sand.u32 %s25, 1
          %s125 = scalar_lea.sflag [#allocation3], %s124
          %s126 = sand.u32 %s25, 1
          %s127 = smul.addr %s126, 8
          %s128 = scalar_lea.vmem [#allocation2], %s127
          %s129 = smul.u32 2, %s15
          %131 = vsyncadd %s125, 0
          %s132 = smul.addr %s129, 4
          %s133 = scalar_lea.hbm %s0, %s132
          %s134 = sshll.u32 %s133, 4
          %s135 = int_to_ptr.hbm [resolvable:$true] %s134
          %s136 = sshll.u32 %s128, 4
          %s137 = int_to_ptr.vmem [resolvable:$true] %s136
          %142 = dma.hbm_to_vmem [thread:$0]  %s135, 128, %s137, %s125, 64, 64, 4
        $region24: #{tpu_custom_call.1} parent=19 // pred_fallthru
          _
      $region20: #{tpu_custom_call.1} parent=5 // pred_fallthru
        _
      %p143 = scmp.le.s32.totalorder 1, %s15
      %p144 = scmp.lt.s32.totalorder %s15, 3
      %p145 = pnand %p143, %p144
      %p146 = pneg %p145
      // Predicated region
      $region25: #{tpu_custom_call.1} parent=5 // pred_check
        _
      $region26: #{tpu_custom_call.1} parent=5 // pred_check_branch
        %148 = sbr.rel (%p145) target = $region28
      $region27: #{tpu_custom_call.1} parent=5 // pred_region
        %s149 = ssub.s32 %s15, 1
        %s150 = sand.u32 %s28, 1
        %s151 = scalar_lea.sflag [#allocation3], %s150
        %s152 = sand.u32 %s28, 1
        %s153 = smul.addr %s152, 8
        %s154 = scalar_lea.vmem [#allocation2], %s153
        // Predicated region
        $region29: #{tpu_custom_call.1} parent=27 // pred_check
          %p155 = pneg %p41
        $region30: #{tpu_custom_call.1} parent=27 // pred_check_branch
          %157 = sbr.rel (%p155) target = $region32
        $region31: #{tpu_custom_call.1} parent=27 // pred_region
          %159 = dma.done %s151, 128
        $region32: #{tpu_custom_call.1} parent=27 // pred_fallthru
          _
        // Predicated region
        $region33: #{tpu_custom_call.1} parent=27 // pred_check
          %p160 = pneg %p62
        $region34: #{tpu_custom_call.1} parent=27 // pred_check_branch
          %162 = sbr.rel (%p160) target = $region36
        $region35: #{tpu_custom_call.1} parent=27 // pred_region
          %164 = dma.done [#allocation6], 256
        $region36: #{tpu_custom_call.1} parent=27 // pred_fallthru
          _
        %s165 = sand.u32 %s28, 1
        %s166 = scalar_lea.sflag [#allocation3], %s165
        %s167 = sand.u32 %s28, 1
        %s168 = smul.addr %s167, 8
        %s169 = scalar_lea.vmem [#allocation2], %s168
        %p170 = pneg %p41
        %p171 = pneg %p38
        %p172 = pneg %p62
        %p173 = pneg %p59
        %p174 = pneg %p88
        %p175 = pneg %p85
        %s176 = sand.u32 %s75, 1
        %s177 = scalar_lea.sflag [#allocation4], %s176
        %s178 = sand.u32 %s75, 1
        %s179 = smul.addr %s178, 16
        %s180 = scalar_lea.vmem [#allocation7], %s179
        %s181 = smul.u32 2, %s20
        %s182 = smul.u32 2, %s20
        %v184 = vld [vmem:[%s154] sm:$0xf]
        %v185 = vld [vmem:[%s154 + $0x4] sm:$0xf]
        %v186 = vld [vmem:[#allocation5] sm:$0xf]
        %v187 = vld [vmem:[#allocation5 + $0x4] sm:$0xf]
        %v188 = vld [vmem:[#allocation5 + $0x8] sm:$0xf]
        %v189 = vld [vmem:[#allocation5 + $0xc] sm:$0xf]
        %v192 = vunpack.c.l.b16 %v184
        %v193 = vunpack.c.l.b16 %v185
        %v194 = vpack.c.b16 %v193, %v192
        %v199 = vunpack.c.l.b16 %v186
        %v200 = vunpack.c.l.b16 %v187
        %v201 = vunpack.c.l.b16 %v188
        %v202 = vunpack.c.l.b16 %v189
        %v203 = vpack.c.b16 %v200, %v199
        %v204 = vpack.c.b16 %v202, %v201
        %vm207 = vcmask 261120
        %v209 = vsel %vm207, %v194, 0
        %211 = vmatpush.bf16.msra.mxu0 0
        %212 = vmatpush.bf16.msra.mxu0 0
        %213 = vmatpush.bf16.msra.mxu0 0
        %214 = vmatpush.bf16.msra.mxu0 0
        %215 = vmatpush.bf16.msra.mxu0 0
        %216 = vmatpush.bf16.msra.mxu0 0
        %217 = vmatpush.bf16.msra.mxu0 %v204
        %218 = vmatpush.bf16.msra.mxu0 %v203
        %219 = vmatmul.bf16.gmra.mxu0 %v209
        %v220 = vpop.f32.mrf.mxu0
        %v221 = vadd.f32 0.0, %v220
        %v222 = vpop.f32.mrf.mxu0
        %v223 = vadd.f32 0.0, %v222
        %224 = vdwg.mxu0
        %227 = vrot.lane.b32.xlu0 %v221, 112
        %v228 = vpop.permute.xlu0 %227
        %229 = vrot.lane.b32.xlu0 %v223, 112
        %v230 = vpop.permute.xlu0 %229
        %233 = vrot.lane.b32.xlu0 %v221, 96
        %v234 = vpop.permute.xlu0 %233
        %235 = vrot.lane.b32.xlu0 %v223, 96
        %v236 = vpop.permute.xlu0 %235
        %239 = vrot.lane.b32.xlu0 %v221, 80
        %v240 = vpop.permute.xlu0 %239
        %241 = vrot.lane.b32.xlu0 %v223, 80
        %v242 = vpop.permute.xlu0 %241
        %245 = vrot.lane.b32.xlu0 %v221, 64
        %v246 = vpop.permute.xlu0 %245
        %247 = vrot.lane.b32.xlu0 %v223, 64
        %v248 = vpop.permute.xlu0 %247
        %251 = vrot.lane.b32.xlu0 %v221, 48
        %v252 = vpop.permute.xlu0 %251
        %253 = vrot.lane.b32.xlu0 %v223, 48
        %v254 = vpop.permute.xlu0 %253
        %257 = vrot.lane.b32.xlu0 %v221, 32
        %v258 = vpop.permute.xlu0 %257
        %259 = vrot.lane.b32.xlu0 %v223, 32
        %v260 = vpop.permute.xlu0 %259
        %263 = vrot.lane.b32.xlu0 %v221, 16
        %v264 = vpop.permute.xlu0 %263
        %265 = vrot.lane.b32.xlu0 %v223, 16
        %v266 = vpop.permute.xlu0 %265
        %v269 = vrot.slane %v234, 4
        %vm270 = vcmask 1047556
        %v271 = vsel %vm270, %v269, %v221
        %v272 = vrot.slane %v221, 4
        %v273 = vsel %vm270, %v234, %v272
        %v275 = vunpack.c.l.s4 1983009808
        %v276 = vunpack.c.0.s8 %v275
        %v277 = vperm.slane %v271, %v276
        %v279 = vunpack.c.l.s4 1983009808
        %v280 = vunpack.c.0.s8 %v279
        %v281 = vperm.slane %v273, %v280
        %v282 = vrot.slane %v240, 4
        %v283 = vsel %vm270, %v282, %v228
        %v284 = vrot.slane %v228, 4
        %v285 = vsel %vm270, %v240, %v284
        %v287 = vunpack.c.l.s4 1983009808
        %v288 = vunpack.c.0.s8 %v287
        %v289 = vperm.slane %v283, %v288
        %v291 = vunpack.c.l.s4 1983009808
        %v292 = vunpack.c.0.s8 %v291
        %v293 = vperm.slane %v285, %v292
        %v294 = vrot.slane %v258, 4
        %v295 = vsel %vm270, %v294, %v246
        %v296 = vrot.slane %v246, 4
        %v297 = vsel %vm270, %v258, %v296
        %v299 = vunpack.c.l.s4 1983009808
        %v300 = vunpack.c.0.s8 %v299
        %v301 = vperm.slane %v295, %v300
        %v303 = vunpack.c.l.s4 1983009808
        %v304 = vunpack.c.0.s8 %v303
        %v305 = vperm.slane %v297, %v304
        %v306 = vrot.slane %v264, 4
        %v307 = vsel %vm270, %v306, %v252
        %v308 = vrot.slane %v252, 4
        %v309 = vsel %vm270, %v264, %v308
        %v311 = vunpack.c.l.s4 1983009808
        %v312 = vunpack.c.0.s8 %v311
        %v313 = vperm.slane %v307, %v312
        %v315 = vunpack.c.l.s4 1983009808
        %v316 = vunpack.c.0.s8 %v315
        %v317 = vperm.slane %v309, %v316
        %v318 = vrot.slane %v289, 4
        %v319 = vsel %vm270, %v318, %v277
        %v320 = vrot.slane %v277, 4
        %v321 = vsel %vm270, %v289, %v320
        %v323 = vunpack.c.l.s4 1934713408
        %v324 = vunpack.c.0.s8 %v323
        %v325 = vperm.slane %v319, %v324
        %v327 = vunpack.c.l.s4 1934713408
        %v328 = vunpack.c.0.s8 %v327
        %v329 = vperm.slane %v321, %v328
        %v330 = vrot.slane %v293, 4
        %v331 = vsel %vm270, %v330, %v281
        %v332 = vrot.slane %v281, 4
        %v333 = vsel %vm270, %v293, %v332
        %v335 = vunpack.c.l.s4 1934713408
        %v336 = vunpack.c.0.s8 %v335
        %v337 = vperm.slane %v331, %v336
        %v339 = vunpack.c.l.s4 1934713408
        %v340 = vunpack.c.0.s8 %v339
        %v341 = vperm.slane %v333, %v340
        %v342 = vrot.slane %v313, 4
        %v343 = vsel %vm270, %v342, %v301
        %v344 = vrot.slane %v301, 4
        %v345 = vsel %vm270, %v313, %v344
        %v347 = vunpack.c.l.s4 1934713408
        %v348 = vunpack.c.0.s8 %v347
        %v349 = vperm.slane %v343, %v348
        %v351 = vunpack.c.l.s4 1934713408
        %v352 = vunpack.c.0.s8 %v351
        %v353 = vperm.slane %v345, %v352
        %v354 = vrot.slane %v317, 4
        %v355 = vsel %vm270, %v354, %v305
        %v356 = vrot.slane %v305, 4
        %v357 = vsel %vm270, %v317, %v356
        %v359 = vunpack.c.l.s4 1934713408
        %v360 = vunpack.c.0.s8 %v359
        %v361 = vperm.slane %v355, %v360
        %v363 = vunpack.c.l.s4 1934713408
        %v364 = vunpack.c.0.s8 %v363
        %v365 = vperm.slane %v357, %v364
        %v366 = vrot.slane %v349, 4
        %v367 = vsel %vm270, %v366, %v325
        %v368 = vrot.slane %v325, 4
        %v369 = vsel %vm270, %v349, %v368
        %v370 = vrot.slane %v353, 4
        %v371 = vsel %vm270, %v370, %v329
        %v372 = vrot.slane %v329, 4
        %v373 = vsel %vm270, %v353, %v372
        %v374 = vrot.slane %v361, 4
        %v375 = vsel %vm270, %v374, %v337
        %v376 = vrot.slane %v337, 4
        %v377 = vsel %vm270, %v361, %v376
        %v378 = vrot.slane %v365, 4
        %v379 = vsel %vm270, %v378, %v341
        %v380 = vrot.slane %v341, 4
        %v381 = vsel %vm270, %v365, %v380
        %v382 = vrot.slane %v236, 4
        %v383 = vsel %vm270, %v382, %v223
        %v384 = vrot.slane %v223, 4
        %v385 = vsel %vm270, %v236, %v384
        %v387 = vunpack.c.l.s4 1983009808
        %v388 = vunpack.c.0.s8 %v387
        %v389 = vperm.slane %v383, %v388
        %v391 = vunpack.c.l.s4 1983009808
        %v392 = vunpack.c.0.s8 %v391
        %v393 = vperm.slane %v385, %v392
        %v394 = vrot.slane %v242, 4
        %v395 = vsel %vm270, %v394, %v230
        %v396 = vrot.slane %v230, 4
        %v397 = vsel %vm270, %v242, %v396
        %v399 = vunpack.c.l.s4 1983009808
        %v400 = vunpack.c.0.s8 %v399
        %v401 = vperm.slane %v395, %v400
        %v403 = vunpack.c.l.s4 1983009808
        %v404 = vunpack.c.0.s8 %v403
        %v405 = vperm.slane %v397, %v404
        %v406 = vrot.slane %v260, 4
        %v407 = vsel %vm270, %v406, %v248
        %v408 = vrot.slane %v248, 4
        %v409 = vsel %vm270, %v260, %v408
        %v411 = vunpack.c.l.s4 1983009808
        %v412 = vunpack.c.0.s8 %v411
        %v413 = vperm.slane %v407, %v412
        %v415 = vunpack.c.l.s4 1983009808
        %v416 = vunpack.c.0.s8 %v415
        %v417 = vperm.slane %v409, %v416
        %v418 = vrot.slane %v266, 4
        %v419 = vsel %vm270, %v418, %v254
        %v420 = vrot.slane %v254, 4
        %v421 = vsel %vm270, %v266, %v420
        %v423 = vunpack.c.l.s4 1983009808
        %v424 = vunpack.c.0.s8 %v423
        %v425 = vperm.slane %v419, %v424
        %v427 = vunpack.c.l.s4 1983009808
        %v428 = vunpack.c.0.s8 %v427
        %v429 = vperm.slane %v421, %v428
        %v430 = vrot.slane %v401, 4
        %v431 = vsel %vm270, %v430, %v389
        %v432 = vrot.slane %v389, 4
        %v433 = vsel %vm270, %v401, %v432
        %v435 = vunpack.c.l.s4 1934713408
        %v436 = vunpack.c.0.s8 %v435
        %v437 = vperm.slane %v431, %v436
        %v439 = vunpack.c.l.s4 1934713408
        %v440 = vunpack.c.0.s8 %v439
        %v441 = vperm.slane %v433, %v440
        %v442 = vrot.slane %v405, 4
        %v443 = vsel %vm270, %v442, %v393
        %v444 = vrot.slane %v393, 4
        %v445 = vsel %vm270, %v405, %v444
        %v447 = vunpack.c.l.s4 1934713408
        %v448 = vunpack.c.0.s8 %v447
        %v449 = vperm.slane %v443, %v448
        %v451 = vunpack.c.l.s4 1934713408
        %v452 = vunpack.c.0.s8 %v451
        %v453 = vperm.slane %v445, %v452
        %v454 = vrot.slane %v425, 4
        %v455 = vsel %vm270, %v454, %v413
        %v456 = vrot.slane %v413, 4
        %v457 = vsel %vm270, %v425, %v456
        %v459 = vunpack.c.l.s4 1934713408
        %v460 = vunpack.c.0.s8 %v459
        %v461 = vperm.slane %v455, %v460
        %v463 = vunpack.c.l.s4 1934713408
        %v464 = vunpack.c.0.s8 %v463
        %v465 = vperm.slane %v457, %v464
        %v466 = vrot.slane %v429, 4
        %v467 = vsel %vm270, %v466, %v417
        %v468 = vrot.slane %v417, 4
        %v469 = vsel %vm270, %v429, %v468
        %v471 = vunpack.c.l.s4 1934713408
        %v472 = vunpack.c.0.s8 %v471
        %v473 = vperm.slane %v467, %v472
        %v475 = vunpack.c.l.s4 1934713408
        %v476 = vunpack.c.0.s8 %v475
        %v477 = vperm.slane %v469, %v476
        %v478 = vrot.slane %v461, 4
        %v479 = vsel %vm270, %v478, %v437
        %v480 = vrot.slane %v437, 4
        %v481 = vsel %vm270, %v461, %v480
        %v482 = vrot.slane %v465, 4
        %v483 = vsel %vm270, %v482, %v441
        %v484 = vrot.slane %v441, 4
        %v485 = vsel %vm270, %v465, %v484
        %v486 = vrot.slane %v473, 4
        %v487 = vsel %vm270, %v486, %v449
        %v488 = vrot.slane %v449, 4
        %v489 = vsel %vm270, %v473, %v488
        %v490 = vrot.slane %v477, 4
        %v491 = vsel %vm270, %v490, %v453
        %v492 = vrot.slane %v453, 4
        %v493 = vsel %vm270, %v477, %v492
        %vm494 = vcmask 130048
        %v495 = vsel %vm494, %v367, 0.0
        %496 = vadd.xlane.f32.xlu0 %v495
        %v497 = vpop.xlane.xlu0 %496
        %v498 = vsel %vm494, %v369, 0.0
        %499 = vadd.xlane.f32.xlu0 %v498
        %v500 = vpop.xlane.xlu0 %499
        %v501 = vsel %vm494, %v371, 0.0
        %502 = vadd.xlane.f32.xlu0 %v501
        %v503 = vpop.xlane.xlu0 %502
        %v504 = vsel %vm494, %v373, 0.0
        %505 = vadd.xlane.f32.xlu0 %v504
        %v506 = vpop.xlane.xlu0 %505
        %v507 = vsel %vm494, %v375, 0.0
        %508 = vadd.xlane.f32.xlu0 %v507
        %v509 = vpop.xlane.xlu0 %508
        %v510 = vsel %vm494, %v377, 0.0
        %511 = vadd.xlane.f32.xlu0 %v510
        %v512 = vpop.xlane.xlu0 %511
        %v513 = vsel %vm494, %v379, 0.0
        %514 = vadd.xlane.f32.xlu0 %v513
        %v515 = vpop.xlane.xlu0 %514
        %v516 = vsel %vm494, %v381, 0.0
        %517 = vadd.xlane.f32.xlu0 %v516
        %v518 = vpop.xlane.xlu0 %517
        %v519 = vsel %vm494, %v479, 0.0
        %520 = vadd.xlane.f32.xlu0 %v519
        %v521 = vpop.xlane.xlu0 %520
        %v522 = vsel %vm494, %v481, 0.0
        %523 = vadd.xlane.f32.xlu0 %v522
        %v524 = vpop.xlane.xlu0 %523
        %v525 = vsel %vm494, %v483, 0.0
        %526 = vadd.xlane.f32.xlu0 %v525
        %v527 = vpop.xlane.xlu0 %526
        %v528 = vsel %vm494, %v485, 0.0
        %529 = vadd.xlane.f32.xlu0 %v528
        %v530 = vpop.xlane.xlu0 %529
        %v531 = vsel %vm494, %v487, 0.0
        %532 = vadd.xlane.f32.xlu0 %v531
        %v533 = vpop.xlane.xlu0 %532
        %v534 = vsel %vm494, %v489, 0.0
        %535 = vadd.xlane.f32.xlu0 %v534
        %v536 = vpop.xlane.xlu0 %535
        %v537 = vsel %vm494, %v491, 0.0
        %538 = vadd.xlane.f32.xlu0 %v537
        %v539 = vpop.xlane.xlu0 %538
        %v540 = vsel %vm494, %v493, 0.0
        %541 = vadd.xlane.f32.xlu0 %v540
        %v542 = vpop.xlane.xlu0 %541
        %v543 = vrcp.pop 16.0
        %v544 = vmul.f32 16.0, %v543
        %v545 = vsub.f32 1.0, %v544
        %v546 = vmul.f32 %v543, %v545
        %v547 = vadd.f32 %v543, %v546
        %vm548 = vweird.f32 %v543
        %v549 = vsel %vm548, %v543, %v547
        %v550 = vmul.f32 %v497, %v549
        %v551 = vmul.f32 %v500, %v549
        %v552 = vmul.f32 %v503, %v549
        %v553 = vmul.f32 %v506, %v549
        %v554 = vmul.f32 %v509, %v549
        %v555 = vmul.f32 %v512, %v549
        %v556 = vmul.f32 %v515, %v549
        %v557 = vmul.f32 %v518, %v549
        %v558 = vmul.f32 %v521, %v549
        %v559 = vmul.f32 %v524, %v549
        %v560 = vmul.f32 %v527, %v549
        %v561 = vmul.f32 %v530, %v549
        %v562 = vmul.f32 %v533, %v549
        %v563 = vmul.f32 %v536, %v549
        %v564 = vmul.f32 %v539, %v549
        %v565 = vmul.f32 %v542, %v549
        %v566 = vsub.f32 %v367, %v550
        %v567 = vsub.f32 %v369, %v551
        %v568 = vsub.f32 %v371, %v552
        %v569 = vsub.f32 %v373, %v553
        %v570 = vsub.f32 %v375, %v554
        %v571 = vsub.f32 %v377, %v555
        %v572 = vsub.f32 %v379, %v556
        %v573 = vsub.f32 %v381, %v557
        %v574 = vsub.f32 %v479, %v558
        %v575 = vsub.f32 %v481, %v559
        %v576 = vsub.f32 %v483, %v560
        %v577 = vsub.f32 %v485, %v561
        %v578 = vsub.f32 %v487, %v562
        %v579 = vsub.f32 %v489, %v563
        %v580 = vsub.f32 %v491, %v564
        %v581 = vsub.f32 %v493, %v565
        %v582 = vmul.f32 %v566, %v566
        %v583 = vmul.f32 %v567, %v567
        %v584 = vmul.f32 %v568, %v568
        %v585 = vmul.f32 %v569, %v569
        %v586 = vmul.f32 %v570, %v570
        %v587 = vmul.f32 %v571, %v571
        %v588 = vmul.f32 %v572, %v572
        %v589 = vmul.f32 %v573, %v573
        %v590 = vmul.f32 %v574, %v574
        %v591 = vmul.f32 %v575, %v575
        %v592 = vmul.f32 %v576, %v576
        %v593 = vmul.f32 %v577, %v577
        %v594 = vmul.f32 %v578, %v578
        %v595 = vmul.f32 %v579, %v579
        %v596 = vmul.f32 %v580, %v580
        %v597 = vmul.f32 %v581, %v581
        %v598 = vsel %vm494, %v582, 0.0
        %599 = vadd.xlane.f32.xlu0 %v598
        %v600 = vpop.xlane.xlu0 %599
        %v601 = vsel %vm494, %v583, 0.0
        %602 = vadd.xlane.f32.xlu0 %v601
        %v603 = vpop.xlane.xlu0 %602
        %v604 = vsel %vm494, %v584, 0.0
        %605 = vadd.xlane.f32.xlu0 %v604
        %v606 = vpop.xlane.xlu0 %605
        %v607 = vsel %vm494, %v585, 0.0
        %608 = vadd.xlane.f32.xlu0 %v607
        %v609 = vpop.xlane.xlu0 %608
        %v610 = vsel %vm494, %v586, 0.0
        %611 = vadd.xlane.f32.xlu0 %v610
        %v612 = vpop.xlane.xlu0 %611
        %v613 = vsel %vm494, %v587, 0.0
        %614 = vadd.xlane.f32.xlu0 %v613
        %v615 = vpop.xlane.xlu0 %614
        %v616 = vsel %vm494, %v588, 0.0
        %617 = vadd.xlane.f32.xlu0 %v616
        %v618 = vpop.xlane.xlu0 %617
        %v619 = vsel %vm494, %v589, 0.0
        %620 = vadd.xlane.f32.xlu0 %v619
        %v621 = vpop.xlane.xlu0 %620
        %v622 = vsel %vm494, %v590, 0.0
        %623 = vadd.xlane.f32.xlu0 %v622
        %v624 = vpop.xlane.xlu0 %623
        %v625 = vsel %vm494, %v591, 0.0
        %626 = vadd.xlane.f32.xlu0 %v625
        %v627 = vpop.xlane.xlu0 %626
        %v628 = vsel %vm494, %v592, 0.0
        %629 = vadd.xlane.f32.xlu0 %v628
        %v630 = vpop.xlane.xlu0 %629
        %v631 = vsel %vm494, %v593, 0.0
        %632 = vadd.xlane.f32.xlu0 %v631
        %v633 = vpop.xlane.xlu0 %632
        %v634 = vsel %vm494, %v594, 0.0
        %635 = vadd.xlane.f32.xlu0 %v634
        %v636 = vpop.xlane.xlu0 %635
        %v637 = vsel %vm494, %v595, 0.0
        %638 = vadd.xlane.f32.xlu0 %v637
        %v639 = vpop.xlane.xlu0 %638
        %v640 = vsel %vm494, %v596, 0.0
        %641 = vadd.xlane.f32.xlu0 %v640
        %v642 = vpop.xlane.xlu0 %641
        %v643 = vsel %vm494, %v597, 0.0
        %644 = vadd.xlane.f32.xlu0 %v643
        %v645 = vpop.xlane.xlu0 %644
        %v646 = vmul.f32 %v600, %v549
        %v647 = vmul.f32 %v603, %v549
        %v648 = vmul.f32 %v606, %v549
        %v649 = vmul.f32 %v609, %v549
        %v650 = vmul.f32 %v612, %v549
        %v651 = vmul.f32 %v615, %v549
        %v652 = vmul.f32 %v618, %v549
        %v653 = vmul.f32 %v621, %v549
        %v654 = vmul.f32 %v624, %v549
        %v655 = vmul.f32 %v627, %v549
        %v656 = vmul.f32 %v630, %v549
        %v657 = vmul.f32 %v633, %v549
        %v658 = vmul.f32 %v636, %v549
        %v659 = vmul.f32 %v639, %v549
        %v660 = vmul.f32 %v642, %v549
        %v661 = vmul.f32 %v645, %v549
        %v662 = vadd.f32 %v646, 1e-05
        %v663 = vadd.f32 %v647, 1e-05
        %v664 = vadd.f32 %v648, 1e-05
        %v665 = vadd.f32 %v649, 1e-05
        %v666 = vadd.f32 %v650, 1e-05
        %v667 = vadd.f32 %v651, 1e-05
        %v668 = vadd.f32 %v652, 1e-05
        %v669 = vadd.f32 %v653, 1e-05
        %v670 = vadd.f32 %v654, 1e-05
        %v671 = vadd.f32 %v655, 1e-05
        %v672 = vadd.f32 %v656, 1e-05
        %v673 = vadd.f32 %v657, 1e-05
        %v674 = vadd.f32 %v658, 1e-05
        %v675 = vadd.f32 %v659, 1e-05
        %v676 = vadd.f32 %v660, 1e-05
        %v677 = vadd.f32 %v661, 1e-05
        %v678 = vrsqrt.pop %v662
        %v679 = vmul.f32 %v678, %v662
        %v680 = vmul.f32 %v679, %v678
        %v681 = vmul.f32 0.5, %v680
        %v682 = vsub.f32 1.5, %v681
        %v683 = vmul.f32 %v678, %v682
        %vm684 = vweird.f32 %v662
        %vm685 = vweird.f32 %v678
        %vm686 = vmor %vm684, %vm685
        %v687 = vsel %vm686, %v678, %v683
        %v688 = vrsqrt.pop %v663
        %v689 = vmul.f32 %v688, %v663
        %v690 = vmul.f32 %v689, %v688
        %v691 = vmul.f32 0.5, %v690
        %v692 = vsub.f32 1.5, %v691
        %v693 = vmul.f32 %v688, %v692
        %vm694 = vweird.f32 %v663
        %vm695 = vweird.f32 %v688
        %vm696 = vmor %vm694, %vm695
        %v697 = vsel %vm696, %v688, %v693
        %v698 = vrsqrt.pop %v664
        %v699 = vmul.f32 %v698, %v664
        %v700 = vmul.f32 %v699, %v698
        %v701 = vmul.f32 0.5, %v700
        %v702 = vsub.f32 1.5, %v701
        %v703 = vmul.f32 %v698, %v702
        %vm704 = vweird.f32 %v664
        %vm705 = vweird.f32 %v698
        %vm706 = vmor %vm704, %vm705
        %v707 = vsel %vm706, %v698, %v703
        %v708 = vrsqrt.pop %v665
        %v709 = vmul.f32 %v708, %v665
        %v710 = vmul.f32 %v709, %v708
        %v711 = vmul.f32 0.5, %v710
        %v712 = vsub.f32 1.5, %v711
        %v713 = vmul.f32 %v708, %v712
        %vm714 = vweird.f32 %v665
        %vm715 = vweird.f32 %v708
        %vm716 = vmor %vm714, %vm715
        %v717 = vsel %vm716, %v708, %v713
        %v718 = vrsqrt.pop %v666
        %v719 = vmul.f32 %v718, %v666
        %v720 = vmul.f32 %v719, %v718
        %v721 = vmul.f32 0.5, %v720
        %v722 = vsub.f32 1.5, %v721
        %v723 = vmul.f32 %v718, %v722
        %vm724 = vweird.f32 %v666
        %vm725 = vweird.f32 %v718
        %vm726 = vmor %vm724, %vm725
        %v727 = vsel %vm726, %v718, %v723
        %v728 = vrsqrt.pop %v667
        %v729 = vmul.f32 %v728, %v667
        %v730 = vmul.f32 %v729, %v728
        %v731 = vmul.f32 0.5, %v730
        %v732 = vsub.f32 1.5, %v731
        %v733 = vmul.f32 %v728, %v732
        %vm734 = vweird.f32 %v667
        %vm735 = vweird.f32 %v728
        %vm736 = vmor %vm734, %vm735
        %v737 = vsel %vm736, %v728, %v733
        %v738 = vrsqrt.pop %v668
        %v739 = vmul.f32 %v738, %v668
        %v740 = vmul.f32 %v739, %v738
        %v741 = vmul.f32 0.5, %v740
        %v742 = vsub.f32 1.5, %v741
        %v743 = vmul.f32 %v738, %v742
        %vm744 = vweird.f32 %v668
        %vm745 = vweird.f32 %v738
        %vm746 = vmor %vm744, %vm745
        %v747 = vsel %vm746, %v738, %v743
        %v748 = vrsqrt.pop %v669
        %v749 = vmul.f32 %v748, %v669
        %v750 = vmul.f32 %v749, %v748
        %v751 = vmul.f32 0.5, %v750
        %v752 = vsub.f32 1.5, %v751
        %v753 = vmul.f32 %v748, %v752
        %vm754 = vweird.f32 %v669
        %vm755 = vweird.f32 %v748
        %vm756 = vmor %vm754, %vm755
        %v757 = vsel %vm756, %v748, %v753
        %v758 = vrsqrt.pop %v670
        %v759 = vmul.f32 %v758, %v670
        %v760 = vmul.f32 %v759, %v758
        %v761 = vmul.f32 0.5, %v760
        %v762 = vsub.f32 1.5, %v761
        %v763 = vmul.f32 %v758, %v762
        %vm764 = vweird.f32 %v670
        %vm765 = vweird.f32 %v758
        %vm766 = vmor %vm764, %vm765
        %v767 = vsel %vm766, %v758, %v763
        %v768 = vrsqrt.pop %v671
        %v769 = vmul.f32 %v768, %v671
        %v770 = vmul.f32 %v769, %v768
        %v771 = vmul.f32 0.5, %v770
        %v772 = vsub.f32 1.5, %v771
        %v773 = vmul.f32 %v768, %v772
        %vm774 = vweird.f32 %v671
        %vm775 = vweird.f32 %v768
        %vm776 = vmor %vm774, %vm775
        %v777 = vsel %vm776, %v768, %v773
        %v778 = vrsqrt.pop %v672
        %v779 = vmul.f32 %v778, %v672
        %v780 = vmul.f32 %v779, %v778
        %v781 = vmul.f32 0.5, %v780
        %v782 = vsub.f32 1.5, %v781
        %v783 = vmul.f32 %v778, %v782
        %vm784 = vweird.f32 %v672
        %vm785 = vweird.f32 %v778
        %vm786 = vmor %vm784, %vm785
        %v787 = vsel %vm786, %v778, %v783
        %v788 = vrsqrt.pop %v673
        %v789 = vmul.f32 %v788, %v673
        %v790 = vmul.f32 %v789, %v788
        %v791 = vmul.f32 0.5, %v790
        %v792 = vsub.f32 1.5, %v791
        %v793 = vmul.f32 %v788, %v792
        %vm794 = vweird.f32 %v673
        %vm795 = vweird.f32 %v788
        %vm796 = vmor %vm794, %vm795
        %v797 = vsel %vm796, %v788, %v793
        %v798 = vrsqrt.pop %v674
        %v799 = vmul.f32 %v798, %v674
        %v800 = vmul.f32 %v799, %v798
        %v801 = vmul.f32 0.5, %v800
        %v802 = vsub.f32 1.5, %v801
        %v803 = vmul.f32 %v798, %v802
        %vm804 = vweird.f32 %v674
        %vm805 = vweird.f32 %v798
        %vm806 = vmor %vm804, %vm805
        %v807 = vsel %vm806, %v798, %v803
        %v808 = vrsqrt.pop %v675
        %v809 = vmul.f32 %v808, %v675
        %v810 = vmul.f32 %v809, %v808
        %v811 = vmul.f32 0.5, %v810
        %v812 = vsub.f32 1.5, %v811
        %v813 = vmul.f32 %v808, %v812
        %vm814 = vweird.f32 %v675
        %vm815 = vweird.f32 %v808
        %vm816 = vmor %vm814, %vm815
        %v817 = vsel %vm816, %v808, %v813
        %v818 = vrsqrt.pop %v676
        %v819 = vmul.f32 %v818, %v676
        %v820 = vmul.f32 %v819, %v818
        %v821 = vmul.f32 0.5, %v820
        %v822 = vsub.f32 1.5, %v821
        %v823 = vmul.f32 %v818, %v822
        %vm824 = vweird.f32 %v676
        %vm825 = vweird.f32 %v818
        %vm826 = vmor %vm824, %vm825
        %v827 = vsel %vm826, %v818, %v823
        %v828 = vrsqrt.pop %v677
        %v829 = vmul.f32 %v828, %v677
        %v830 = vmul.f32 %v829, %v828
        %v831 = vmul.f32 0.5, %v830
        %v832 = vsub.f32 1.5, %v831
        %v833 = vmul.f32 %v828, %v832
        %vm834 = vweird.f32 %v677
        %vm835 = vweird.f32 %v828
        %vm836 = vmor %vm834, %vm835
        %v837 = vsel %vm836, %v828, %v833
        %v838 = vmul.f32 %v566, %v687
        %v839 = vmul.f32 %v567, %v697
        %v840 = vmul.f32 %v568, %v707
        %v841 = vmul.f32 %v569, %v717
        %v842 = vmul.f32 %v570, %v727
        %v843 = vmul.f32 %v571, %v737
        %v844 = vmul.f32 %v572, %v747
        %v845 = vmul.f32 %v573, %v757
        %v846 = vmul.f32 %v574, %v767
        %v847 = vmul.f32 %v575, %v777
        %v848 = vmul.f32 %v576, %v787
        %v849 = vmul.f32 %v577, %v797
        %v850 = vmul.f32 %v578, %v807
        %v851 = vmul.f32 %v579, %v817
        %v852 = vmul.f32 %v580, %v827
        %v853 = vmul.f32 %v581, %v837
        %v854 = vrot.slane %v840, 4
        %v855 = vsel %vm270, %v854, %v838
        %v856 = vrot.slane %v838, 4
        %v857 = vsel %vm270, %v840, %v856
        %v859 = vunpack.c.l.s4 1983009808
        %v860 = vunpack.c.0.s8 %v859
        %v861 = vperm.slane %v855, %v860
        %v863 = vunpack.c.l.s4 1983009808
        %v864 = vunpack.c.0.s8 %v863
        %v865 = vperm.slane %v857, %v864
        %v866 = vrot.slane %v841, 4
        %v867 = vsel %vm270, %v866, %v839
        %v868 = vrot.slane %v839, 4
        %v869 = vsel %vm270, %v841, %v868
        %v871 = vunpack.c.l.s4 1983009808
        %v872 = vunpack.c.0.s8 %v871
        %v873 = vperm.slane %v867, %v872
        %v875 = vunpack.c.l.s4 1983009808
        %v876 = vunpack.c.0.s8 %v875
        %v877 = vperm.slane %v869, %v876
        %v878 = vrot.slane %v844, 4
        %v879 = vsel %vm270, %v878, %v842
        %v880 = vrot.slane %v842, 4
        %v881 = vsel %vm270, %v844, %v880
        %v883 = vunpack.c.l.s4 1983009808
        %v884 = vunpack.c.0.s8 %v883
        %v885 = vperm.slane %v879, %v884
        %v887 = vunpack.c.l.s4 1983009808
        %v888 = vunpack.c.0.s8 %v887
        %v889 = vperm.slane %v881, %v888
        %v890 = vrot.slane %v845, 4
        %v891 = vsel %vm270, %v890, %v843
        %v892 = vrot.slane %v843, 4
        %v893 = vsel %vm270, %v845, %v892
        %v895 = vunpack.c.l.s4 1983009808
        %v896 = vunpack.c.0.s8 %v895
        %v897 = vperm.slane %v891, %v896
        %v899 = vunpack.c.l.s4 1983009808
        %v900 = vunpack.c.0.s8 %v899
        %v901 = vperm.slane %v893, %v900
        %v902 = vrot.slane %v873, 4
        %v903 = vsel %vm270, %v902, %v861
        %v904 = vrot.slane %v861, 4
        %v905 = vsel %vm270, %v873, %v904
        %v907 = vunpack.c.l.s4 1934713408
        %v908 = vunpack.c.0.s8 %v907
        %v909 = vperm.slane %v903, %v908
        %v911 = vunpack.c.l.s4 1934713408
        %v912 = vunpack.c.0.s8 %v911
        %v913 = vperm.slane %v905, %v912
        %v914 = vrot.slane %v877, 4
        %v915 = vsel %vm270, %v914, %v865
        %v916 = vrot.slane %v865, 4
        %v917 = vsel %vm270, %v877, %v916
        %v919 = vunpack.c.l.s4 1934713408
        %v920 = vunpack.c.0.s8 %v919
        %v921 = vperm.slane %v915, %v920
        %v923 = vunpack.c.l.s4 1934713408
        %v924 = vunpack.c.0.s8 %v923
        %v925 = vperm.slane %v917, %v924
        %v926 = vrot.slane %v897, 4
        %v927 = vsel %vm270, %v926, %v885
        %v928 = vrot.slane %v885, 4
        %v929 = vsel %vm270, %v897, %v928
        %v931 = vunpack.c.l.s4 1934713408
        %v932 = vunpack.c.0.s8 %v931
        %v933 = vperm.slane %v927, %v932
        %v935 = vunpack.c.l.s4 1934713408
        %v936 = vunpack.c.0.s8 %v935
        %v937 = vperm.slane %v929, %v936
        %v938 = vrot.slane %v901, 4
        %v939 = vsel %vm270, %v938, %v889
        %v940 = vrot.slane %v889, 4
        %v941 = vsel %vm270, %v901, %v940
        %v943 = vunpack.c.l.s4 1934713408
        %v944 = vunpack.c.0.s8 %v943
        %v945 = vperm.slane %v939, %v944
        %v947 = vunpack.c.l.s4 1934713408
        %v948 = vunpack.c.0.s8 %v947
        %v949 = vperm.slane %v941, %v948
        %v950 = vrot.slane %v933, 4
        %v951 = vsel %vm270, %v950, %v909
        %v952 = vrot.slane %v909, 4
        %v953 = vsel %vm270, %v933, %v952
        %v954 = vrot.slane %v937, 4
        %v955 = vsel %vm270, %v954, %v913
        %v956 = vrot.slane %v913, 4
        %v957 = vsel %vm270, %v937, %v956
        %v958 = vrot.slane %v945, 4
        %v959 = vsel %vm270, %v958, %v921
        %v960 = vrot.slane %v921, 4
        %v961 = vsel %vm270, %v945, %v960
        %v962 = vrot.slane %v949, 4
        %v963 = vsel %vm270, %v962, %v925
        %v964 = vrot.slane %v925, 4
        %v965 = vsel %vm270, %v949, %v964
        %v966 = vrot.slane %v848, 4
        %v967 = vsel %vm270, %v966, %v846
        %v968 = vrot.slane %v846, 4
        %v969 = vsel %vm270, %v848, %v968
        %v971 = vunpack.c.l.s4 1983009808
        %v972 = vunpack.c.0.s8 %v971
        %v973 = vperm.slane %v967, %v972
        %v975 = vunpack.c.l.s4 1983009808
        %v976 = vunpack.c.0.s8 %v975
        %v977 = vperm.slane %v969, %v976
        %v978 = vrot.slane %v849, 4
        %v979 = vsel %vm270, %v978, %v847
        %v980 = vrot.slane %v847, 4
        %v981 = vsel %vm270, %v849, %v980
        %v983 = vunpack.c.l.s4 1983009808
        %v984 = vunpack.c.0.s8 %v983
        %v985 = vperm.slane %v979, %v984
        %v987 = vunpack.c.l.s4 1983009808
        %v988 = vunpack.c.0.s8 %v987
        %v989 = vperm.slane %v981, %v988
        %v990 = vrot.slane %v852, 4
        %v991 = vsel %vm270, %v990, %v850
        %v992 = vrot.slane %v850, 4
        %v993 = vsel %vm270, %v852, %v992
        %v995 = vunpack.c.l.s4 1983009808
        %v996 = vunpack.c.0.s8 %v995
        %v997 = vperm.slane %v991, %v996
        %v999 = vunpack.c.l.s4 1983009808
        %v1000 = vunpack.c.0.s8 %v999
        %v1001 = vperm.slane %v993, %v1000
        %v1002 = vrot.slane %v853, 4
        %v1003 = vsel %vm270, %v1002, %v851
        %v1004 = vrot.slane %v851, 4
        %v1005 = vsel %vm270, %v853, %v1004
        %v1007 = vunpack.c.l.s4 1983009808
        %v1008 = vunpack.c.0.s8 %v1007
        %v1009 = vperm.slane %v1003, %v1008
        %v1011 = vunpack.c.l.s4 1983009808
        %v1012 = vunpack.c.0.s8 %v1011
        %v1013 = vperm.slane %v1005, %v1012
        %v1014 = vrot.slane %v985, 4
        %v1015 = vsel %vm270, %v1014, %v973
        %v1016 = vrot.slane %v973, 4
        %v1017 = vsel %vm270, %v985, %v1016
        %v1019 = vunpack.c.l.s4 1934713408
        %v1020 = vunpack.c.0.s8 %v1019
        %v1021 = vperm.slane %v1015, %v1020
        %v1023 = vunpack.c.l.s4 1934713408
        %v1024 = vunpack.c.0.s8 %v1023
        %v1025 = vperm.slane %v1017, %v1024
        %v1026 = vrot.slane %v989, 4
        %v1027 = vsel %vm270, %v1026, %v977
        %v1028 = vrot.slane %v977, 4
        %v1029 = vsel %vm270, %v989, %v1028
        %v1031 = vunpack.c.l.s4 1934713408
        %v1032 = vunpack.c.0.s8 %v1031
        %v1033 = vperm.slane %v1027, %v1032
        %v1035 = vunpack.c.l.s4 1934713408
        %v1036 = vunpack.c.0.s8 %v1035
        %v1037 = vperm.slane %v1029, %v1036
        %v1038 = vrot.slane %v1009, 4
        %v1039 = vsel %vm270, %v1038, %v997
        %v1040 = vrot.slane %v997, 4
        %v1041 = vsel %vm270, %v1009, %v1040
        %v1043 = vunpack.c.l.s4 1934713408
        %v1044 = vunpack.c.0.s8 %v1043
        %v1045 = vperm.slane %v1039, %v1044
        %v1047 = vunpack.c.l.s4 1934713408
        %v1048 = vunpack.c.0.s8 %v1047
        %v1049 = vperm.slane %v1041, %v1048
        %v1050 = vrot.slane %v1013, 4
        %v1051 = vsel %vm270, %v1050, %v1001
        %v1052 = vrot.slane %v1001, 4
        %v1053 = vsel %vm270, %v1013, %v1052
        %v1055 = vunpack.c.l.s4 1934713408
        %v1056 = vunpack.c.0.s8 %v1055
        %v1057 = vperm.slane %v1051, %v1056
        %v1059 = vunpack.c.l.s4 1934713408
        %v1060 = vunpack.c.0.s8 %v1059
        %v1061 = vperm.slane %v1053, %v1060
        %v1062 = vrot.slane %v1045, 4
        %v1063 = vsel %vm270, %v1062, %v1021
        %v1064 = vrot.slane %v1021, 4
        %v1065 = vsel %vm270, %v1045, %v1064
        %v1066 = vrot.slane %v1049, 4
        %v1067 = vsel %vm270, %v1066, %v1025
        %v1068 = vrot.slane %v1025, 4
        %v1069 = vsel %vm270, %v1049, %v1068
        %v1070 = vrot.slane %v1057, 4
        %v1071 = vsel %vm270, %v1070, %v1033
        %v1072 = vrot.slane %v1033, 4
        %v1073 = vsel %vm270, %v1057, %v1072
        %v1074 = vrot.slane %v1061, 4
        %v1075 = vsel %vm270, %v1074, %v1037
        %v1076 = vrot.slane %v1037, 4
        %v1077 = vsel %vm270, %v1061, %v1076
        %1080 = vrot.lane.b32.xlu0 %v953, 16
        %v1081 = vpop.permute.xlu0 %1080
        %1082 = vrot.lane.b32.xlu0 %v1065, 16
        %v1083 = vpop.permute.xlu0 %1082
        %1088 = vrot.lane.b32.xlu0 %v955, 32
        %v1089 = vpop.permute.xlu0 %1088
        %1090 = vrot.lane.b32.xlu0 %v1067, 32
        %v1091 = vpop.permute.xlu0 %1090
        %1096 = vrot.lane.b32.xlu0 %v957, 48
        %v1097 = vpop.permute.xlu0 %1096
        %1098 = vrot.lane.b32.xlu0 %v1069, 48
        %v1099 = vpop.permute.xlu0 %1098
        %1104 = vrot.lane.b32.xlu0 %v959, 64
        %v1105 = vpop.permute.xlu0 %1104
        %1106 = vrot.lane.b32.xlu0 %v1071, 64
        %v1107 = vpop.permute.xlu0 %1106
        %1112 = vrot.lane.b32.xlu0 %v961, 80
        %v1113 = vpop.permute.xlu0 %1112
        %1114 = vrot.lane.b32.xlu0 %v1073, 80
        %v1115 = vpop.permute.xlu0 %1114
        %1120 = vrot.lane.b32.xlu0 %v963, 96
        %v1121 = vpop.permute.xlu0 %1120
        %1122 = vrot.lane.b32.xlu0 %v1075, 96
        %v1123 = vpop.permute.xlu0 %1122
        %1128 = vrot.lane.b32.xlu0 %v965, 112
        %v1129 = vpop.permute.xlu0 %1128
        %1130 = vrot.lane.b32.xlu0 %v1077, 112
        %v1131 = vpop.permute.xlu0 %1130
        %v1134 = vsel %vm494, %v951, %v1081
        %v1135 = vsel %vm494, %v1063, %v1083
        %v1136 = vsel %vm207, %v1134, %v1089
        %v1137 = vsel %vm207, %v1135, %v1091
        %vm1138 = vcmask 392192
        %v1139 = vsel %vm1138, %v1136, %v1097
        %v1140 = vsel %vm1138, %v1137, %v1099
        %vm1141 = vcmask 523264
        %v1142 = vsel %vm1141, %v1139, %v1105
        %v1143 = vsel %vm1141, %v1140, %v1107
        %vm1144 = vcmask 654336
        %v1145 = vsel %vm1144, %v1142, %v1113
        %v1146 = vsel %vm1144, %v1143, %v1115
        %vm1147 = vcmask 785408
        %v1148 = vsel %vm1147, %v1145, %v1121
        %v1149 = vsel %vm1147, %v1146, %v1123
        %vm1150 = vcmask 916480
        %v1151 = vsel %vm1150, %v1148, %v1129
        %v1152 = vsel %vm1150, %v1149, %v1131
        %1153 = vst [vmem:[%s180] sm:$0xff] %v1151
        %1154 = vst [vmem:[%s180 + $0x8] sm:$0xff] %v1152
        %s1155 = sand.u32 %s75, 1
        %s1156 = scalar_lea.sflag [#allocation4], %s1155
        %s1157 = sand.u32 %s75, 1
        %s1158 = smul.addr %s1157, 16
        %s1159 = scalar_lea.vmem [#allocation7], %s1158
        // Predicated region
        $region37: #{tpu_custom_call.1} parent=27 // pred_check
          %p1160 = pneg %p85
        $region38: #{tpu_custom_call.1} parent=27 // pred_check_branch
          %1162 = sbr.rel (%p1160) target = $region40
        $region39: #{tpu_custom_call.1} parent=27 // pred_region
          %s1163 = smul.u32 2, %s20
          %1165 = vsyncadd %s1156, 0
          %s1166 = smul.addr %s1163, 8
          %s1167 = scalar_lea.hbm %s2, %s1166
          %s1168 = sshll.u32 %s1159, 4
          %s1169 = int_to_ptr.vmem [resolvable:$true] %s1168
          %s1170 = sshll.u32 %s1167, 4
          %s1171 = int_to_ptr.hbm [resolvable:$true] %s1170
          %1176 = dma.vmem_to_hbm [thread:$0]  %s1169, 256, %s1171, %s1156, 128, 128, 8
        $region40: #{tpu_custom_call.1} parent=27 // pred_fallthru
          _
      $region28: #{tpu_custom_call.1} parent=5 // pred_fallthru
        _
      %p1177 = scmp.le.s32.totalorder 2, %s15
      // Predicated region
      $region41: #{tpu_custom_call.1} parent=5 // pred_check
        %p1178 = pneg %p1177
      $region42: #{tpu_custom_call.1} parent=5 // pred_check_branch
        %1180 = sbr.rel (%p1178) target = $region44
      $region43: #{tpu_custom_call.1} parent=5 // pred_region
        %s1181 = ssub.s32 %s15, 2
        // Predicated region
        $region45: #{tpu_custom_call.1} parent=43 // pred_check
          %p1182 = pneg %p91
        $region46: #{tpu_custom_call.1} parent=43 // pred_check_branch
          %1184 = sbr.rel (%p1182) target = $region48
        $region47: #{tpu_custom_call.1} parent=43 // pred_region
          %s1185 = sand.u32 %s76, 1
          %s1186 = scalar_lea.sflag [#allocation4], %s1185
          %s1187 = sand.u32 %s76, 1
          %s1188 = smul.addr %s1187, 16
          %s1189 = scalar_lea.vmem [#allocation7], %s1188
          %1191 = dma.done %s1186, 256
        $region48: #{tpu_custom_call.1} parent=43 // pred_fallthru
          _
      $region44: #{tpu_custom_call.1} parent=5 // pred_fallthru
        _
    $region6: #{tpu_custom_call.1} parent=1 // loop_footer
      %s19 = sadd.s32 1, %s15
    $region7: #{tpu_custom_call.1} parent=1 // loop_footer_branch
      %14 = sbr.rel target = $region3
    $region8: #{tpu_custom_call.1} parent=1 // loop_exit
      _
    %1192 = vsyncpa [#allocation3], 1
    %s1193 = scalar_lea.sflag [#allocation3], 1
    %1194 = vsyncpa %s1193, 1
    %1195 = vsyncpa [#allocation6], 1
    %1196 = vsyncpa [#allocation4], 1
    %s1197 = scalar_lea.sflag [#allocation4], 1
    %1198 = vsyncpa %s1197, 1

</llo_original>
